<compile_context>
chip_gen: v7x
topology: tpu7x:2x2x1
jax: 0.10.0
libtpu: 0.0.40
codegen_flags: <defaults>
</compile_context>

<pallas_src>
import jax
import jax.numpy as jnp
from jax import lax
from jax.experimental import pallas as pl
from jax.experimental.pallas import tpu as pltpu

TB = 128   # batch rows per grid step (fills the MXU M dim; 256 on v6e/v7x is also fine)
TV = 256   # vocab (output) columns per grid step


def bigram_kernel(tok_ref, emb_ref, w_ref, bias_ref, out_ref, emb_buf):
    """One grid step (b, j):

    tok_ref : (TB, 1)   int32 VMEM  token ids for this batch block
    emb_ref : (Vp, E)   bf16  VMEM  full (padded) embedding table
    w_ref   : (E, TV)   bf16  VMEM  pre-transposed linear weight tile
    bias_ref: (1, TV)   f32   VMEM  bias tile
    out_ref : (TB, TV)  f32   VMEM  logits tile
    emb_buf : (TB, E)   bf16  VMEM scratch -- gathered rows, persists across j
    """
    j = pl.program_id(1)

    # Gather the TB embedding rows once per batch block (j == 0) as a one-hot
    # MXU matmul: exact row selection, no per-row DMAs or semaphore waits.
    @pl.when(j == 0)
    def _():
        ids = tok_ref[...]                                            # (TB, 1)
        cols = lax.broadcasted_iota(jnp.int32, (TB, emb_ref.shape[0]), 1)
        one_hot = (cols == ids).astype(jnp.bfloat16)                  # (TB, Vp)
        emb = jnp.dot(one_hot, emb_ref[...],
                      preferred_element_type=jnp.float32)             # (TB, E)
        emb_buf[...] = emb.astype(jnp.bfloat16)                       # exact (bf16 rows)

    # (TB, E) @ (E, TV) -> (TB, TV); bf16 operands, f32 accumulation on the MXU.
    logits = jnp.dot(emb_buf[...], w_ref[...],
                     preferred_element_type=jnp.float32)

    # Dropout is identity at inference.
    # TODO(synk): training-mode dropout (PRNG mask + 1/(1-p) scaling) not emitted.
    out_ref[...] = logits + bias_ref[...]


def bigram_forward(tokens, emb_table, lin_weight, lin_bias):
    """tokens: (B, 1) int; emb_table: (V, E); lin_weight: (V, E); lin_bias: (V,).
    Returns logits of shape (B, 1, V) f32 (matches the PyTorch module)."""
    B = tokens.shape[0]
    V, E = emb_table.shape

    b_pad = pl.cdiv(B, TB) * TB
    v_pad = pl.cdiv(V, TV) * TV

    tok = jnp.pad(tokens.reshape(B, 1).astype(jnp.int32),
                  ((0, b_pad - B), (0, 0)))                       # pad rows use token 0
    emb_bf16 = jnp.pad(emb_table.astype(jnp.bfloat16),
                       ((0, v_pad - V), (0, 0)))                  # never selected
    # Pre-transpose once (constant-folded by XLA): (E, V) is the native (K, N)
    # MXU feed and is lane-dense on V. Pad V so it tiles by TV.
    w_t = jnp.pad(lin_weight.astype(jnp.bfloat16).T, ((0, 0), (0, v_pad - V)))
    bias2d = jnp.pad(lin_bias.astype(jnp.float32).reshape(1, V),
                     ((0, 0), (0, v_pad - V)))

    grid = (b_pad // TB, v_pad // TV)

    out = pl.pallas_call(
        bigram_kernel,
        out_shape=jax.ShapeDtypeStruct((b_pad, v_pad), jnp.float32),
        grid_spec=pltpu.PrefetchScalarGridSpec(
            num_scalar_prefetch=0,
            grid=grid,
            in_specs=[
                pl.BlockSpec((TB, 1), lambda b, j: (b, 0)),        # token ids
                pl.BlockSpec((v_pad, E), lambda b, j: (0, 0)),     # embedding table
                pl.BlockSpec((E, TV), lambda b, j: (0, j)),        # weight tile
                pl.BlockSpec((1, TV), lambda b, j: (0, j)),        # bias tile
            ],
            out_specs=pl.BlockSpec((TB, TV), lambda b, j: (b, j)),
            scratch_shapes=[pltpu.VMEM((TB, E), jnp.bfloat16)],    # gathered rows
        ),
        compiler_params=pltpu.CompilerParams(
            dimension_semantics=("parallel", "arbitrary"),
            vmem_limit_bytes=32 * 1024 * 1024,
        ),
    )(tok, emb_bf16, w_t, bias2d)

    return out[:B, :V].reshape(B, 1, V)


def reference_forward(tokens, emb_table, lin_weight, lin_bias):
    """Mirror of the kernel math (bf16-rounded operands, f32 accumulation)."""
    emb = emb_table.astype(jnp.bfloat16).astype(jnp.float32)[tokens.reshape(-1)]
    w = lin_weight.astype(jnp.bfloat16).astype(jnp.float32)
    logits = emb @ w.T + lin_bias                                   # (B, V)
    return logits[:, None, :]                                       # (B, 1, V)


if __name__ == "__main__":
    # Small config consistent with the module: vocab_size=256, embed_dim=32, batch=2.
    VOCAB, EMBED, BATCH = 256, 32, 2

    key = jax.random.PRNGKey(0)
    k_emb, k_lin, k_tok = jax.random.split(key, 3)

    # _init_weights: N(0, 0.02) weights, zero bias.
    emb_table = 0.02 * jax.random.normal(k_emb, (VOCAB, EMBED), dtype=jnp.float32)
    lin_weight = 0.02 * jax.random.normal(k_lin, (VOCAB, EMBED), dtype=jnp.float32)
    lin_bias = jnp.zeros((VOCAB,), dtype=jnp.float32)

    tokens = jax.random.randint(k_tok, (BATCH, 1), 0, VOCAB, dtype=jnp.int32)

    out = bigram_forward(tokens, emb_table, lin_weight, lin_bias)
    out = jax.block_until_ready(out)

    ref = reference_forward(tokens, emb_table, lin_weight, lin_bias)
    assert out.shape == (BATCH, 1, VOCAB), out.shape
    assert jnp.allclose(out, ref, atol=1e-4, rtol=1e-4), "mismatch vs reference"

    print("KERNEL_OK")
</pallas_src>

<mosaic_0001>
module attributes {stable_mosaic.version = 11 : i64} {
  func.func @bigram_kernel(%arg0: i32, %arg1: i32, %arg2: memref<128x1xi32, #tpu.memory_space<vmem>>, %arg3: memref<256x32xbf16, #tpu.memory_space<vmem>>, %arg4: memref<32x256xbf16, #tpu.memory_space<vmem>>, %arg5: memref<1x256xf32, #tpu.memory_space<vmem>>, %arg6: memref<128x256xf32, #tpu.memory_space<vmem>>, %arg7: memref<128x32xbf16, #tpu.memory_space<vmem>>) attributes {dimension_semantics = [#tpu.dimension_semantics<parallel>, #tpu.dimension_semantics<arbitrary>], iteration_bounds = array<i64: 1, 1>, scalar_prefetch = 0 : i64, scratch_operands = 1 : i64, tpu.core_type = #tpu.core_type<tc>, window_params = [{transform_indices = @transform_0, window_bounds = array<i64: 128, 1>}, {pipeline_mode = #tpu.pipeline_mode<synchronous>, transform_indices = @transform_1, window_bounds = array<i64: 256, 32>}, {transform_indices = @transform_2, window_bounds = array<i64: 32, 256>}, {transform_indices = @transform_3, window_bounds = array<i64: 1, 256>}, {transform_indices = @transform_4, window_bounds = array<i64: 128, 256>}]} {
    %c0_i32 = arith.constant 0 : i32
    %0 = arith.cmpi eq, %arg1, %c0_i32 : i32
    %1 = arith.extui %0 : i1 to i32
    %c0_i32_0 = arith.constant 0 : i32
    %2 = arith.cmpi ne, %1, %c0_i32_0 : i32
    scf.if %2 {
      %c0_8 = arith.constant 0 : index
      %c0_9 = arith.constant 0 : index
      %10 = vector.load %arg2[%c0_8, %c0_9] : memref<128x1xi32, #tpu.memory_space<vmem>>, vector<128x1xi32>
      %11 = tpu.iota {dimensions = array<i32: 1>} : vector<128x256xi32>
      %12 = vector.broadcast %10 : vector<128x1xi32> to vector<128x256xi32>
      %13 = arith.cmpi eq, %11, %12 : vector<128x256xi32>
      %14 = arith.extui %13 : vector<128x256xi1> to vector<128x256xi32>
      %15 = arith.sitofp %14 : vector<128x256xi32> to vector<128x256xf32>
      %16 = arith.truncf %15 : vector<128x256xf32> to vector<128x256xbf16>
      %c0_10 = arith.constant 0 : index
      %c0_11 = arith.constant 0 : index
      %17 = vector.load %arg3[%c0_10, %c0_11] : memref<256x32xbf16, #tpu.memory_space<vmem>>, vector<256x32xbf16>
      %cst_12 = arith.constant dense<0.000000e+00> : vector<128x32xf32>
      %18 = tpu.matmul %16, %17, %cst_12 {dimension_numbers = #tpu.dot_dimension_numbers<[1], [0], [0], [1], [0, 0, 1, 1], [], []>} : vector<128x256xbf16>, vector<256x32xbf16>, vector<128x32xf32> -> vector<128x32xf32>
      %19 = arith.truncf %18 : vector<128x32xf32> to vector<128x32xbf16>
      %c0_13 = arith.constant 0 : index
      %c0_14 = arith.constant 0 : index
      %20 = vector.load %arg7[%c0_13, %c0_14] : memref<128x32xbf16, #tpu.memory_space<vmem>>, vector<128x32xbf16>
      tpu.vector_store %arg7[%c0_13, %c0_14], %19 {strides = array<i32>} : memref<128x32xbf16, #tpu.memory_space<vmem>>, vector<128x32xbf16>,
    } else {
    }
    %c0 = arith.constant 0 : index
    %c0_1 = arith.constant 0 : index
    %3 = vector.load %arg7[%c0, %c0_1] : memref<128x32xbf16, #tpu.memory_space<vmem>>, vector<128x32xbf16>
    %c0_2 = arith.constant 0 : index
    %c0_3 = arith.constant 0 : index
    %4 = vector.load %arg4[%c0_2, %c0_3] : memref<32x256xbf16, #tpu.memory_space<vmem>>, vector<32x256xbf16>
    %cst = arith.constant dense<0.000000e+00> : vector<128x256xf32>
    %5 = tpu.matmul %3, %4, %cst {dimension_numbers = #tpu.dot_dimension_numbers<[1], [0], [0], [1], [0, 0, 1, 1], [], []>} : vector<128x32xbf16>, vector<32x256xbf16>, vector<128x256xf32> -> vector<128x256xf32>
    %c0_4 = arith.constant 0 : index
    %c0_5 = arith.constant 0 : index
    %6 = vector.load %arg5[%c0_4, %c0_5] : memref<1x256xf32, #tpu.memory_space<vmem>>, vector<1x256xf32>
    %7 = vector.broadcast %6 : vector<1x256xf32> to vector<128x256xf32>
    %8 = arith.addf %5, %7 : vector<128x256xf32>
    %c0_6 = arith.constant 0 : index
    %c0_7 = arith.constant 0 : index
    %9 = vector.load %arg6[%c0_6, %c0_7] : memref<128x256xf32, #tpu.memory_space<vmem>>, vector<128x256xf32>
    tpu.vector_store %arg6[%c0_6, %c0_7], %8 {strides = array<i32>} : memref<128x256xf32, #tpu.memory_space<vmem>>, vector<128x256xf32>,
    return
  }
  func.func @transform_0(%arg0: i32, %arg1: i32) -> (i32, i32) {
    %c0_i32 = arith.constant 0 : i32
    %c0_i32_0 = arith.constant 0 : i32
    return %arg0, %c0_i32 : i32, i32
  }
  func.func @transform_1(%arg0: i32, %arg1: i32) -> (i32, i32) {
    %c0_i32 = arith.constant 0 : i32
    %c0_i32_0 = arith.constant 0 : i32
    %c0_i32_1 = arith.constant 0 : i32
    return %c0_i32, %c0_i32_0 : i32, i32
  }
  func.func @transform_2(%arg0: i32, %arg1: i32) -> (i32, i32) {
    %c0_i32 = arith.constant 0 : i32
    %c0_i32_0 = arith.constant 0 : i32
    return %c0_i32, %arg1 : i32, i32
  }
  func.func @transform_3(%arg0: i32, %arg1: i32) -> (i32, i32) {
    %c0_i32 = arith.constant 0 : i32
    %c0_i32_0 = arith.constant 0 : i32
    return %c0_i32, %arg1 : i32, i32
  }
  func.func @transform_4(%arg0: i32, %arg1: i32) -> (i32, i32) {
    %c0_i32 = arith.constant 0 : i32
    return %arg0, %arg1 : i32, i32
  }
}

</mosaic_0001>

<llo_original>
// kernel: tpu_custom_call.1
$region0: #{tpu_custom_call.1}
  #allocation0 [shape = 'u32[]', space=smem, size = 0x4, offset = 0x4, fixed_abs, tag = 'smem constant byte address 0x4 - core index']
  #allocation1 [shape = 'u32[144,128]{1,0:T(1,128)}', space=vmem, size = 0x12000, scoped, tag = 'internal scratch']
  #allocation2 [shape = 'bf16[128,32]{1,0:T(16,128)(2,1)}', space=vmem, size = 0x8000, scoped, tag = 'scratch operand']
  %s0 = inlined_call_operand.vmem [shape: s32[128,1], index: 0, kind: input, shape index: {}]
  %s1 = inlined_call_operand.vmem [shape: bf16[256,32], index: 1, kind: input, shape index: {}]
  %s2 = inlined_call_operand.vmem [shape: bf16[32,256], index: 2, kind: input, shape index: {}]
  %s3 = inlined_call_operand.vmem [shape: f32[1,256], index: 3, kind: input, shape index: {}]
  %s4 = inlined_call_operand.hbm [shape: f32[128,256], index: 4, kind: output, shape index: {}]
  %s5 = sld [smem:[#allocation0]]
  $region30: #{tpu_custom_call.1} parent=0
    _
  %s7 = ssub.s32 1, %s5
  %s8 = scalar_select 0, %s7, %s5
  $region1: #{tpu_custom_call.1} parent=0
    #allocation3 [shape = 'u8[131072]{0}', space=vmem, size = 0x20000, scoped, tag = 'output window, operand 0, single buffered']
    #allocation4 [shape = 's32[1]{0}', space=sflag, size = 0x4, scoped, tag = 'scoped memory for tpu_custom_call.1']
    %9 = vsyncpa [#allocation4], 0
    // Predicated region
    $region2: #{tpu_custom_call.1} parent=1 // pred_check
      _
    $region3: #{tpu_custom_call.1} parent=1 // pred_check_branch
      %11 = sbr.rel (0) target = $region5
    $region4: #{tpu_custom_call.1} parent=1 // pred_region
      _
    $region5: #{tpu_custom_call.1} parent=1 // pred_fallthru
      _
    // Predicated region
    $region6: #{tpu_custom_call.1} parent=1 // pred_check
      _
    $region7: #{tpu_custom_call.1} parent=1 // pred_check_branch
      %13 = sbr.rel (0) target = $region9
    $region8: #{tpu_custom_call.1} parent=1 // pred_region
      _
    $region9: #{tpu_custom_call.1} parent=1 // pred_fallthru
      _
    // Predicated region
    $region10: #{tpu_custom_call.1} parent=1 // pred_check
      _
    $region11: #{tpu_custom_call.1} parent=1 // pred_check_branch
      %15 = sbr.rel (0) target = $region13
    $region12: #{tpu_custom_call.1} parent=1 // pred_region
      _
    $region13: #{tpu_custom_call.1} parent=1 // pred_fallthru
      _
    // Predicated region
    $region14: #{tpu_custom_call.1} parent=1 // pred_check
      _
    $region15: #{tpu_custom_call.1} parent=1 // pred_check_branch
      %17 = sbr.rel (0) target = $region17
    $region16: #{tpu_custom_call.1} parent=1 // pred_region
      _
    $region17: #{tpu_custom_call.1} parent=1 // pred_fallthru
      _
    %p19 = scmp.eq.s32.totalorder 0, 0
    // Predicated region
    $region18: #{tpu_custom_call.1} parent=1 // pred_check
      %p20 = pneg %p19
    $region19: #{tpu_custom_call.1} parent=1 // pred_check_branch
      %22 = sbr.rel (%p20) target = $region21
    $region20: #{tpu_custom_call.1} parent=1 // pred_region
      %v23 = vld [vmem:[%s0] sm:$0xff]
      %v24 = vld [vmem:[%s0 + $0x8] sm:$0xff]
      %v25 = vld [vmem:[%s0 + $0x10] sm:$0xff]
      %v26 = vld [vmem:[%s0 + $0x18] sm:$0xff]
      %v27 = vld [vmem:[%s0 + $0x20] sm:$0xff]
      %v28 = vld [vmem:[%s0 + $0x28] sm:$0xff]
      %v29 = vld [vmem:[%s0 + $0x30] sm:$0xff]
      %v30 = vld [vmem:[%s0 + $0x38] sm:$0xff]
      %v31 = vld [vmem:[%s0 + $0x40] sm:$0xff]
      %v32 = vld [vmem:[%s0 + $0x48] sm:$0xff]
      %v33 = vld [vmem:[%s0 + $0x50] sm:$0xff]
      %v34 = vld [vmem:[%s0 + $0x58] sm:$0xff]
      %v35 = vld [vmem:[%s0 + $0x60] sm:$0xff]
      %v36 = vld [vmem:[%s0 + $0x68] sm:$0xff]
      %v37 = vld [vmem:[%s0 + $0x70] sm:$0xff]
      %v38 = vld [vmem:[%s0 + $0x78] sm:$0xff]
      %v39 = vlaneseq
      %v40 = vand.u32 %v39, 127
      %v41 = vadd.s32 %v40, 128
      %42 = vset.pattern.permute.xlu0 0
      %43 = vperm.xlu0 %42, %v23
      %v44 = vpop.permute.xlu0 %43
      %45 = vset.pattern.permute.xlu0 0
      %46 = vperm.xlu0 %45, %v24
      %v47 = vpop.permute.xlu0 %46
      %48 = vset.pattern.permute.xlu0 0
      %49 = vperm.xlu0 %48, %v25
      %v50 = vpop.permute.xlu0 %49
      %51 = vset.pattern.permute.xlu0 0
      %52 = vperm.xlu0 %51, %v26
      %v53 = vpop.permute.xlu0 %52
      %54 = vset.pattern.permute.xlu0 0
      %55 = vperm.xlu0 %54, %v27
      %v56 = vpop.permute.xlu0 %55
      %57 = vset.pattern.permute.xlu0 0
      %58 = vperm.xlu0 %57, %v28
      %v59 = vpop.permute.xlu0 %58
      %60 = vset.pattern.permute.xlu0 0
      %61 = vperm.xlu0 %60, %v29
      %v62 = vpop.permute.xlu0 %61
      %63 = vset.pattern.permute.xlu0 0
      %64 = vperm.xlu0 %63, %v30
      %v65 = vpop.permute.xlu0 %64
      %66 = vset.pattern.permute.xlu0 0
      %67 = vperm.xlu0 %66, %v31
      %v68 = vpop.permute.xlu0 %67
      %69 = vset.pattern.permute.xlu0 0
      %70 = vperm.xlu0 %69, %v32
      %v71 = vpop.permute.xlu0 %70
      %72 = vset.pattern.permute.xlu0 0
      %73 = vperm.xlu0 %72, %v33
      %v74 = vpop.permute.xlu0 %73
      %75 = vset.pattern.permute.xlu0 0
      %76 = vperm.xlu0 %75, %v34
      %v77 = vpop.permute.xlu0 %76
      %78 = vset.pattern.permute.xlu0 0
      %79 = vperm.xlu0 %78, %v35
      %v80 = vpop.permute.xlu0 %79
      %81 = vset.pattern.permute.xlu0 0
      %82 = vperm.xlu0 %81, %v36
      %v83 = vpop.permute.xlu0 %82
      %84 = vset.pattern.permute.xlu0 0
      %85 = vperm.xlu0 %84, %v37
      %v86 = vpop.permute.xlu0 %85
      %87 = vset.pattern.permute.xlu0 0
      %88 = vperm.xlu0 %87, %v38
      %v89 = vpop.permute.xlu0 %88
      %vm90 = vcmp.eq.s32.totalorder %v40, %v44
      %vm91 = vcmp.eq.s32.totalorder %v41, %v44
      %vm92 = vcmp.eq.s32.totalorder %v40, %v47
      %vm93 = vcmp.eq.s32.totalorder %v41, %v47
      %vm94 = vcmp.eq.s32.totalorder %v40, %v50
      %vm95 = vcmp.eq.s32.totalorder %v41, %v50
      %vm96 = vcmp.eq.s32.totalorder %v40, %v53
      %vm97 = vcmp.eq.s32.totalorder %v41, %v53
      %vm98 = vcmp.eq.s32.totalorder %v40, %v56
      %vm99 = vcmp.eq.s32.totalorder %v41, %v56
      %vm100 = vcmp.eq.s32.totalorder %v40, %v59
      %vm101 = vcmp.eq.s32.totalorder %v41, %v59
      %vm102 = vcmp.eq.s32.totalorder %v40, %v62
      %vm103 = vcmp.eq.s32.totalorder %v41, %v62
      %vm104 = vcmp.eq.s32.totalorder %v40, %v65
      %vm105 = vcmp.eq.s32.totalorder %v41, %v65
      %vm106 = vcmp.eq.s32.totalorder %v40, %v68
      %vm107 = vcmp.eq.s32.totalorder %v41, %v68
      %vm108 = vcmp.eq.s32.totalorder %v40, %v71
      %vm109 = vcmp.eq.s32.totalorder %v41, %v71
      %vm110 = vcmp.eq.s32.totalorder %v40, %v74
      %vm111 = vcmp.eq.s32.totalorder %v41, %v74
      %vm112 = vcmp.eq.s32.totalorder %v40, %v77
      %vm113 = vcmp.eq.s32.totalorder %v41, %v77
      %vm114 = vcmp.eq.s32.totalorder %v40, %v80
      %vm115 = vcmp.eq.s32.totalorder %v41, %v80
      %vm116 = vcmp.eq.s32.totalorder %v40, %v83
      %vm117 = vcmp.eq.s32.totalorder %v41, %v83
      %vm118 = vcmp.eq.s32.totalorder %v40, %v86
      %vm119 = vcmp.eq.s32.totalorder %v41, %v86
      %vm120 = vcmp.eq.s32.totalorder %v40, %v89
      %vm121 = vcmp.eq.s32.totalorder %v41, %v89
      %v122 = vsel %vm90, 1, 0
      %v123 = vsel %vm91, 1, 0
      %v124 = vsel %vm92, 1, 0
      %v125 = vsel %vm93, 1, 0
      %v126 = vsel %vm94, 1, 0
      %v127 = vsel %vm95, 1, 0
      %v128 = vsel %vm96, 1, 0
      %v129 = vsel %vm97, 1, 0
      %v130 = vsel %vm98, 1, 0
      %v131 = vsel %vm99, 1, 0
      %v132 = vsel %vm100, 1, 0
      %v133 = vsel %vm101, 1, 0
      %v134 = vsel %vm102, 1, 0
      %v135 = vsel %vm103, 1, 0
      %v136 = vsel %vm104, 1, 0
      %v137 = vsel %vm105, 1, 0
      %v138 = vsel %vm106, 1, 0
      %v139 = vsel %vm107, 1, 0
      %v140 = vsel %vm108, 1, 0
      %v141 = vsel %vm109, 1, 0
      %v142 = vsel %vm110, 1, 0
      %v143 = vsel %vm111, 1, 0
      %v144 = vsel %vm112, 1, 0
      %v145 = vsel %vm113, 1, 0
      %v146 = vsel %vm114, 1, 0
      %v147 = vsel %vm115, 1, 0
      %v148 = vsel %vm116, 1, 0
      %v149 = vsel %vm117, 1, 0
      %v150 = vsel %vm118, 1, 0
      %v151 = vsel %vm119, 1, 0
      %v152 = vsel %vm120, 1, 0
      %v153 = vsel %vm121, 1, 0
      %v154 = vcvt.s32.f32 %v122
      %v155 = vcvt.s32.f32 %v123
      %v156 = vcvt.s32.f32 %v124
      %v157 = vcvt.s32.f32 %v125
      %v158 = vcvt.s32.f32 %v126
      %v159 = vcvt.s32.f32 %v127
      %v160 = vcvt.s32.f32 %v128
      %v161 = vcvt.s32.f32 %v129
      %v162 = vcvt.s32.f32 %v130
      %v163 = vcvt.s32.f32 %v131
      %v164 = vcvt.s32.f32 %v132
      %v165 = vcvt.s32.f32 %v133
      %v166 = vcvt.s32.f32 %v134
      %v167 = vcvt.s32.f32 %v135
      %v168 = vcvt.s32.f32 %v136
      %v169 = vcvt.s32.f32 %v137
      %v170 = vcvt.s32.f32 %v138
      %v171 = vcvt.s32.f32 %v139
      %v172 = vcvt.s32.f32 %v140
      %v173 = vcvt.s32.f32 %v141
      %v174 = vcvt.s32.f32 %v142
      %v175 = vcvt.s32.f32 %v143
      %v176 = vcvt.s32.f32 %v144
      %v177 = vcvt.s32.f32 %v145
      %v178 = vcvt.s32.f32 %v146
      %v179 = vcvt.s32.f32 %v147
      %v180 = vcvt.s32.f32 %v148
      %v181 = vcvt.s32.f32 %v149
      %v182 = vcvt.s32.f32 %v150
      %v183 = vcvt.s32.f32 %v151
      %v184 = vcvt.s32.f32 %v152
      %v185 = vcvt.s32.f32 %v153
      %v186 = vpack.c.bf16 %v156, %v154
      %v187 = vpack.c.bf16 %v157, %v155
      %v188 = vpack.c.bf16 %v160, %v158
      %v189 = vpack.c.bf16 %v161, %v159
      %v190 = vpack.c.bf16 %v164, %v162
      %v191 = vpack.c.bf16 %v165, %v163
      %v192 = vpack.c.bf16 %v168, %v166
      %v193 = vpack.c.bf16 %v169, %v167
      %v194 = vpack.c.bf16 %v172, %v170
      %v195 = vpack.c.bf16 %v173, %v171
      %v196 = vpack.c.bf16 %v176, %v174
      %v197 = vpack.c.bf16 %v177, %v175
      %v198 = vpack.c.bf16 %v180, %v178
      %v199 = vpack.c.bf16 %v181, %v179
      %v200 = vpack.c.bf16 %v184, %v182
      %v201 = vpack.c.bf16 %v185, %v183
      %v202 = vld [vmem:[%s1] sm:$0xf]
      %v203 = vld [vmem:[%s1 + $0x4] sm:$0xf]
      %v204 = vld [vmem:[%s1 + $0x8] sm:$0xf]
      %v205 = vld [vmem:[%s1 + $0xc] sm:$0xf]
      %v206 = vld [vmem:[%s1 + $0x10] sm:$0xf]
      %v207 = vld [vmem:[%s1 + $0x14] sm:$0xf]
      %v208 = vld [vmem:[%s1 + $0x18] sm:$0xf]
      %v209 = vld [vmem:[%s1 + $0x1c] sm:$0xf]
      %v210 = vld [vmem:[%s1 + $0x20] sm:$0xf]
      %v211 = vld [vmem:[%s1 + $0x24] sm:$0xf]
      %v212 = vld [vmem:[%s1 + $0x28] sm:$0xf]
      %v213 = vld [vmem:[%s1 + $0x2c] sm:$0xf]
      %v214 = vld [vmem:[%s1 + $0x30] sm:$0xf]
      %v215 = vld [vmem:[%s1 + $0x34] sm:$0xf]
      %v216 = vld [vmem:[%s1 + $0x38] sm:$0xf]
      %v217 = vld [vmem:[%s1 + $0x3c] sm:$0xf]
      %v218 = vld [vmem:[%s1 + $0x40] sm:$0xf]
      %v219 = vld [vmem:[%s1 + $0x44] sm:$0xf]
      %v220 = vld [vmem:[%s1 + $0x48] sm:$0xf]
      %v221 = vld [vmem:[%s1 + $0x4c] sm:$0xf]
      %v222 = vld [vmem:[%s1 + $0x50] sm:$0xf]
      %v223 = vld [vmem:[%s1 + $0x54] sm:$0xf]
      %v224 = vld [vmem:[%s1 + $0x58] sm:$0xf]
      %v225 = vld [vmem:[%s1 + $0x5c] sm:$0xf]
      %v226 = vld [vmem:[%s1 + $0x60] sm:$0xf]
      %v227 = vld [vmem:[%s1 + $0x64] sm:$0xf]
      %v228 = vld [vmem:[%s1 + $0x68] sm:$0xf]
      %v229 = vld [vmem:[%s1 + $0x6c] sm:$0xf]
      %v230 = vld [vmem:[%s1 + $0x70] sm:$0xf]
      %v231 = vld [vmem:[%s1 + $0x74] sm:$0xf]
      %v232 = vld [vmem:[%s1 + $0x78] sm:$0xf]
      %v233 = vld [vmem:[%s1 + $0x7c] sm:$0xf]
      %v266 = vunpack.c.l.b16 %v202
      %v267 = vunpack.c.l.b16 %v203
      %v268 = vunpack.c.l.b16 %v204
      %v269 = vunpack.c.l.b16 %v205
      %v270 = vunpack.c.l.b16 %v206
      %v271 = vunpack.c.l.b16 %v207
      %v272 = vunpack.c.l.b16 %v208
      %v273 = vunpack.c.l.b16 %v209
      %v274 = vunpack.c.l.b16 %v210
      %v275 = vunpack.c.l.b16 %v211
      %v276 = vunpack.c.l.b16 %v212
      %v277 = vunpack.c.l.b16 %v213
      %v278 = vunpack.c.l.b16 %v214
      %v279 = vunpack.c.l.b16 %v215
      %v280 = vunpack.c.l.b16 %v216
      %v281 = vunpack.c.l.b16 %v217
      %v282 = vunpack.c.l.b16 %v218
      %v283 = vunpack.c.l.b16 %v219
      %v284 = vunpack.c.l.b16 %v220
      %v285 = vunpack.c.l.b16 %v221
      %v286 = vunpack.c.l.b16 %v222
      %v287 = vunpack.c.l.b16 %v223
      %v288 = vunpack.c.l.b16 %v224
      %v289 = vunpack.c.l.b16 %v225
      %v290 = vunpack.c.l.b16 %v226
      %v291 = vunpack.c.l.b16 %v227
      %v292 = vunpack.c.l.b16 %v228
      %v293 = vunpack.c.l.b16 %v229
      %v294 = vunpack.c.l.b16 %v230
      %v295 = vunpack.c.l.b16 %v231
      %v296 = vunpack.c.l.b16 %v232
      %v297 = vunpack.c.l.b16 %v233
      %v298 = vpack.c.b16 %v267, %v266
      %v299 = vpack.c.b16 %v269, %v268
      %v300 = vpack.c.b16 %v271, %v270
      %v301 = vpack.c.b16 %v273, %v272
      %v302 = vpack.c.b16 %v275, %v274
      %v303 = vpack.c.b16 %v277, %v276
      %v304 = vpack.c.b16 %v279, %v278
      %v305 = vpack.c.b16 %v281, %v280
      %v306 = vpack.c.b16 %v283, %v282
      %v307 = vpack.c.b16 %v285, %v284
      %v308 = vpack.c.b16 %v287, %v286
      %v309 = vpack.c.b16 %v289, %v288
      %v310 = vpack.c.b16 %v291, %v290
      %v311 = vpack.c.b16 %v293, %v292
      %v312 = vpack.c.b16 %v295, %v294
      %v313 = vpack.c.b16 %v297, %v296
      %330 = vmatprep.subr.bf16.mxu0 0
      %331 = vmatpush1.bf16.msra.mxu0 %v298
      %332 = vmatprep.subr.bf16.mxu0 0
      %333 = vmatpush1.bf16.msra.mxu0 %v299
      %334 = vmatprep.subr.bf16.mxu0 0
      %335 = vmatpush1.bf16.msra.mxu0 %v300
      %336 = vmatprep.subr.bf16.mxu0 0
      %337 = vmatpush1.bf16.msra.mxu0 %v301
      %338 = vmatprep.subr.bf16.mxu0 0
      %339 = vmatpush1.bf16.msra.mxu0 %v302
      %340 = vmatprep.subr.bf16.mxu0 0
      %341 = vmatpush1.bf16.msra.mxu0 %v303
      %342 = vmatprep.subr.bf16.mxu0 0
      %343 = vmatpush1.bf16.msra.mxu0 %v304
      %344 = vmatprep.subr.bf16.mxu0 0
      %345 = vmatpush1.bf16.msra.mxu0 %v305
      %346 = vmatprep.subr.bf16.mxu0 0
      %347 = vmatpush1.bf16.msra.mxu0 %v306
      %348 = vmatprep.subr.bf16.mxu0 0
      %349 = vmatpush1.bf16.msra.mxu0 %v307
      %350 = vmatprep.subr.bf16.mxu0 0
      %351 = vmatpush1.bf16.msra.mxu0 %v308
      %352 = vmatprep.subr.bf16.mxu0 0
      %353 = vmatpush1.bf16.msra.mxu0 %v309
      %354 = vmatprep.subr.bf16.mxu0 0
      %355 = vmatpush1.bf16.msra.mxu0 %v310
      %356 = vmatprep.subr.bf16.mxu0 0
      %357 = vmatpush1.bf16.msra.mxu0 %v311
      %358 = vmatprep.subr.bf16.mxu0 0
      %359 = vmatpush1.bf16.msra.mxu0 %v312
      %360 = vmatprep.subr.bf16.mxu0 0
      %361 = vmatpush1.bf16.msra.mxu0 %v313
      %362 = vmatprep.mubr.bf16.mxu0 %v187
      %363 = vmatmul.mubr.bf16.gmra.mrb[0].mxu0 %v186
      %v364 = vpop.f32.mrb[0].mxu0
      %v365 = vadd.f32 0.0, %v364
      %v366 = vpop.f32.mrb[0].mxu0
      %v367 = vpop.f32.mrb[0].mxu0
      %v368 = vadd.f32 0.0, %v367
      %v369 = vpop.f32.mrb[0].mxu0
      %370 = vmatprep.mubr.bf16.mxu0 %v189
      %371 = vmatmul.mubr.bf16.gmra.mrb[0].mxu0 %v188
      %v372 = vpop.f32.mrb[0].mxu0
      %v373 = vadd.f32 0.0, %v372
      %v374 = vpop.f32.mrb[0].mxu0
      %v375 = vpop.f32.mrb[0].mxu0
      %v376 = vadd.f32 0.0, %v375
      %v377 = vpop.f32.mrb[0].mxu0
      %378 = vmatprep.mubr.bf16.mxu0 %v191
      %379 = vmatmul.mubr.bf16.gmra.mrb[0].mxu0 %v190
      %v380 = vpop.f32.mrb[0].mxu0
      %v381 = vadd.f32 0.0, %v380
      %v382 = vpop.f32.mrb[0].mxu0
      %v383 = vpop.f32.mrb[0].mxu0
      %v384 = vadd.f32 0.0, %v383
      %v385 = vpop.f32.mrb[0].mxu0
      %386 = vmatprep.mubr.bf16.mxu0 %v193
      %387 = vmatmul.mubr.bf16.gmra.mrb[0].mxu0 %v192
      %v388 = vpop.f32.mrb[0].mxu0
      %v389 = vadd.f32 0.0, %v388
      %v390 = vpop.f32.mrb[0].mxu0
      %v391 = vpop.f32.mrb[0].mxu0
      %v392 = vadd.f32 0.0, %v391
      %v393 = vpop.f32.mrb[0].mxu0
      %394 = vmatprep.mubr.bf16.mxu0 %v195
      %395 = vmatmul.mubr.bf16.gmra.mrb[0].mxu0 %v194
      %v396 = vpop.f32.mrb[0].mxu0
      %v397 = vadd.f32 0.0, %v396
      %v398 = vpop.f32.mrb[0].mxu0
      %v399 = vpop.f32.mrb[0].mxu0
      %v400 = vadd.f32 0.0, %v399
      %v401 = vpop.f32.mrb[0].mxu0
      %402 = vmatprep.mubr.bf16.mxu0 %v197
      %403 = vmatmul.mubr.bf16.gmra.mrb[0].mxu0 %v196
      %v404 = vpop.f32.mrb[0].mxu0
      %v405 = vadd.f32 0.0, %v404
      %v406 = vpop.f32.mrb[0].mxu0
      %v407 = vpop.f32.mrb[0].mxu0
      %v408 = vadd.f32 0.0, %v407
      %v409 = vpop.f32.mrb[0].mxu0
      %410 = vmatprep.mubr.bf16.mxu0 %v199
      %411 = vmatmul.mubr.bf16.gmra.mrb[0].mxu0 %v198
      %v412 = vpop.f32.mrb[0].mxu0
      %v413 = vadd.f32 0.0, %v412
      %v414 = vpop.f32.mrb[0].mxu0
      %v415 = vpop.f32.mrb[0].mxu0
      %v416 = vadd.f32 0.0, %v415
      %v417 = vpop.f32.mrb[0].mxu0
      %418 = vmatprep.mubr.bf16.mxu0 %v201
      %419 = vmatmul.mubr.bf16.gmra.mrb[0].mxu0 %v200
      %v420 = vpop.f32.mrb[0].mxu0
      %v421 = vadd.f32 0.0, %v420
      %v422 = vpop.f32.mrb[0].mxu0
      %v423 = vpop.f32.mrb[0].mxu0
      %v424 = vadd.f32 0.0, %v423
      %v425 = vpop.f32.mrb[0].mxu0
      %426 = vdwg.mxu0
      %v427 = vpack.c.bf16 %v368, %v365
      %v428 = vpack.c.bf16 %v376, %v373
      %v429 = vpack.c.bf16 %v384, %v381
      %v430 = vpack.c.bf16 %v392, %v389
      %v431 = vpack.c.bf16 %v400, %v397
      %v432 = vpack.c.bf16 %v408, %v405
      %v433 = vpack.c.bf16 %v416, %v413
      %v434 = vpack.c.bf16 %v424, %v421
      %vm435 = vcmask 261120
      %436 = vst.msk [vmem:[#allocation2] sm:$0xff] %vm435, %v427
      %437 = vst.msk [vmem:[#allocation2 + $0x8] sm:$0xff] %vm435, %v428
      %438 = vst.msk [vmem:[#allocation2 + $0x10] sm:$0xff] %vm435, %v429
      %439 = vst.msk [vmem:[#allocation2 + $0x18] sm:$0xff] %vm435, %v430
      %440 = vst.msk [vmem:[#allocation2 + $0x20] sm:$0xff] %vm435, %v431
      %441 = vst.msk [vmem:[#allocation2 + $0x28] sm:$0xff] %vm435, %v432
      %442 = vst.msk [vmem:[#allocation2 + $0x30] sm:$0xff] %vm435, %v433
      %443 = vst.msk [vmem:[#allocation2 + $0x38] sm:$0xff] %vm435, %v434
    $region21: #{tpu_custom_call.1} parent=1 // pred_fallthru
      _
    %v444 = vld [vmem:[#allocation2] sm:$0xff]
    %v445 = vld [vmem:[#allocation2 + $0x8] sm:$0xff]
    %v446 = vld [vmem:[#allocation2 + $0x10] sm:$0xff]
    %v447 = vld [vmem:[#allocation2 + $0x18] sm:$0xff]
    %v448 = vld [vmem:[#allocation2 + $0x20] sm:$0xff]
    %v449 = vld [vmem:[#allocation2 + $0x28] sm:$0xff]
    %v450 = vld [vmem:[#allocation2 + $0x30] sm:$0xff]
    %v451 = vld [vmem:[#allocation2 + $0x38] sm:$0xff]
    %v452 = vld [vmem:[%s2] sm:$0xff]
    %v453 = vld [vmem:[%s2 + $0x8] sm:$0xff]
    %v454 = vld [vmem:[%s2 + $0x10] sm:$0xff]
    %v455 = vld [vmem:[%s2 + $0x18] sm:$0xff]
    %v456 = vld [vmem:[%s3] sm:$0x3]
    %v458 = vlaneseq
    %v459 = vshrl.u32 %v458, 7
    %v460 = vsub.s32 0, %v459
    %v461 = vrot.slane %v456, %v460
    %v462 = vlaneseq
    %v463 = vshrl.u32 %v462, 7
    %v464 = vsub.s32 1, %v463
    %v465 = vrot.slane %v456, %v464
    %v472 = vunpack.c.l.b16 %v452
    %v473 = vunpack.c.h.b16 %v452
    %v474 = vunpack.c.l.b16 %v453
    %v475 = vunpack.c.h.b16 %v453
    %v476 = vunpack.c.l.b16 %v454
    %v477 = vunpack.c.h.b16 %v454
    %v478 = vunpack.c.l.b16 %v455
    %v479 = vunpack.c.h.b16 %v455
    %v480 = vpack.c.b16 %v474, %v472
    %v481 = vpack.c.b16 %v475, %v473
    %v482 = vpack.c.b16 %v478, %v476
    %v483 = vpack.c.b16 %v479, %v477
    %vm488 = vcmask 261120
    %v490 = vsel %vm488, %v444, 0
    %v493 = vsel %vm488, %v445, 0
    %v496 = vsel %vm488, %v446, 0
    %v499 = vsel %vm488, %v447, 0
    %v502 = vsel %vm488, %v448, 0
    %v505 = vsel %vm488, %v449, 0
    %v508 = vsel %vm488, %v450, 0
    %v511 = vsel %vm488, %v451, 0
    %513 = vmatprep.subr.bf16.mxu0 %v481
    %514 = vmatpush1.bf16.msra.mxu0 %v480
    %515 = vmatprep.subr.bf16.mxu0 %v483
    %516 = vmatpush1.bf16.msra.mxu0 %v482
    %517 = vmatprep.subr.bf16.mxu0 0
    %518 = vmatpush1.bf16.msra.mxu0 0
    %519 = vmatprep.subr.bf16.mxu0 0
    %520 = vmatpush1.bf16.msra.mxu0 0
    %521 = vmatprep.subr.bf16.mxu0 0
    %522 = vmatpush1.bf16.msra.mxu0 0
    %523 = vmatprep.subr.bf16.mxu0 0
    %524 = vmatpush1.bf16.msra.mxu0 0
    %525 = vmatprep.subr.bf16.mxu0 0
    %526 = vmatpush1.bf16.msra.mxu0 0
    %527 = vmatprep.subr.bf16.mxu0 0
    %528 = vmatpush1.bf16.msra.mxu0 0
    %529 = vmatprep.subr.bf16.mxu0 0
    %530 = vmatpush1.bf16.msra.mxu0 0
    %531 = vmatprep.subr.bf16.mxu0 0
    %532 = vmatpush1.bf16.msra.mxu0 0
    %533 = vmatprep.subr.bf16.mxu0 0
    %534 = vmatpush1.bf16.msra.mxu0 0
    %535 = vmatprep.subr.bf16.mxu0 0
    %536 = vmatpush1.bf16.msra.mxu0 0
    %537 = vmatprep.subr.bf16.mxu0 0
    %538 = vmatpush1.bf16.msra.mxu0 0
    %539 = vmatprep.subr.bf16.mxu0 0
    %540 = vmatpush1.bf16.msra.mxu0 0
    %541 = vmatprep.subr.bf16.mxu0 0
    %542 = vmatpush1.bf16.msra.mxu0 0
    %543 = vmatprep.subr.bf16.mxu0 0
    %544 = vmatpush1.bf16.msra.mxu0 0
    %545 = vmatprep.mubr.bf16.mxu0 0
    %546 = vmatmul.mubr.bf16.gmra.mrb[0].mxu0 %v490
    %v547 = vpop.f32.mrb[0].mxu0
    %v548 = vadd.f32 %v461, %v547
    %v549 = vpop.f32.mrb[0].mxu0
    %v550 = vadd.f32 %v465, %v549
    %v551 = vpop.f32.mrb[0].mxu0
    %v552 = vadd.f32 %v461, %v551
    %v553 = vpop.f32.mrb[0].mxu0
    %v554 = vadd.f32 %v465, %v553
    %555 = vmatprep.mubr.bf16.mxu0 0
    %556 = vmatmul.mubr.bf16.gmra.mrb[0].mxu0 %v493
    %v557 = vpop.f32.mrb[0].mxu0
    %v558 = vadd.f32 %v461, %v557
    %v559 = vpop.f32.mrb[0].mxu0
    %v560 = vadd.f32 %v465, %v559
    %v561 = vpop.f32.mrb[0].mxu0
    %v562 = vadd.f32 %v461, %v561
    %v563 = vpop.f32.mrb[0].mxu0
    %v564 = vadd.f32 %v465, %v563
    %565 = vmatprep.mubr.bf16.mxu0 0
    %566 = vmatmul.mubr.bf16.gmra.mrb[0].mxu0 %v496
    %v567 = vpop.f32.mrb[0].mxu0
    %v568 = vadd.f32 %v461, %v567
    %v569 = vpop.f32.mrb[0].mxu0
    %v570 = vadd.f32 %v465, %v569
    %v571 = vpop.f32.mrb[0].mxu0
    %v572 = vadd.f32 %v461, %v571
    %v573 = vpop.f32.mrb[0].mxu0
    %v574 = vadd.f32 %v465, %v573
    %575 = vmatprep.mubr.bf16.mxu0 0
    %576 = vmatmul.mubr.bf16.gmra.mrb[0].mxu0 %v499
    %v577 = vpop.f32.mrb[0].mxu0
    %v578 = vadd.f32 %v461, %v577
    %v579 = vpop.f32.mrb[0].mxu0
    %v580 = vadd.f32 %v465, %v579
    %v581 = vpop.f32.mrb[0].mxu0
    %v582 = vadd.f32 %v461, %v581
    %v583 = vpop.f32.mrb[0].mxu0
    %v584 = vadd.f32 %v465, %v583
    %585 = vmatprep.mubr.bf16.mxu0 0
    %586 = vmatmul.mubr.bf16.gmra.mrb[0].mxu0 %v502
    %v587 = vpop.f32.mrb[0].mxu0
    %v588 = vadd.f32 %v461, %v587
    %v589 = vpop.f32.mrb[0].mxu0
    %v590 = vadd.f32 %v465, %v589
    %v591 = vpop.f32.mrb[0].mxu0
    %v592 = vadd.f32 %v461, %v591
    %v593 = vpop.f32.mrb[0].mxu0
    %v594 = vadd.f32 %v465, %v593
    %595 = vmatprep.mubr.bf16.mxu0 0
    %596 = vmatmul.mubr.bf16.gmra.mrb[0].mxu0 %v505
    %v597 = vpop.f32.mrb[0].mxu0
    %v598 = vadd.f32 %v461, %v597
    %v599 = vpop.f32.mrb[0].mxu0
    %v600 = vadd.f32 %v465, %v599
    %v601 = vpop.f32.mrb[0].mxu0
    %v602 = vadd.f32 %v461, %v601
    %v603 = vpop.f32.mrb[0].mxu0
    %v604 = vadd.f32 %v465, %v603
    %605 = vmatprep.mubr.bf16.mxu0 0
    %606 = vmatmul.mubr.bf16.gmra.mrb[0].mxu0 %v508
    %v607 = vpop.f32.mrb[0].mxu0
    %v608 = vadd.f32 %v461, %v607
    %v609 = vpop.f32.mrb[0].mxu0
    %v610 = vadd.f32 %v465, %v609
    %v611 = vpop.f32.mrb[0].mxu0
    %v612 = vadd.f32 %v461, %v611
    %v613 = vpop.f32.mrb[0].mxu0
    %v614 = vadd.f32 %v465, %v613
    %615 = vmatprep.mubr.bf16.mxu0 0
    %616 = vmatmul.mubr.bf16.gmra.mrb[0].mxu0 %v511
    %v617 = vpop.f32.mrb[0].mxu0
    %v618 = vadd.f32 %v461, %v617
    %v619 = vpop.f32.mrb[0].mxu0
    %v620 = vadd.f32 %v465, %v619
    %v621 = vpop.f32.mrb[0].mxu0
    %v622 = vadd.f32 %v461, %v621
    %v623 = vpop.f32.mrb[0].mxu0
    %v624 = vadd.f32 %v465, %v623
    %625 = vdwg.mxu0
    %626 = vst [vmem:[#allocation3] sm:$0xff] %v548
    %627 = vst [vmem:[#allocation3 + $0x8] sm:$0xff] %v550
    %628 = vst [vmem:[#allocation3 + $0x10] sm:$0xff] %v552
    %629 = vst [vmem:[#allocation3 + $0x18] sm:$0xff] %v554
    %630 = vst [vmem:[#allocation3 + $0x20] sm:$0xff] %v558
    %631 = vst [vmem:[#allocation3 + $0x28] sm:$0xff] %v560
    %632 = vst [vmem:[#allocation3 + $0x30] sm:$0xff] %v562
    %633 = vst [vmem:[#allocation3 + $0x38] sm:$0xff] %v564
    %634 = vst [vmem:[#allocation3 + $0x40] sm:$0xff] %v568
    %635 = vst [vmem:[#allocation3 + $0x48] sm:$0xff] %v570
    %636 = vst [vmem:[#allocation3 + $0x50] sm:$0xff] %v572
    %637 = vst [vmem:[#allocation3 + $0x58] sm:$0xff] %v574
    %638 = vst [vmem:[#allocation3 + $0x60] sm:$0xff] %v578
    %639 = vst [vmem:[#allocation3 + $0x68] sm:$0xff] %v580
    %640 = vst [vmem:[#allocation3 + $0x70] sm:$0xff] %v582
    %641 = vst [vmem:[#allocation3 + $0x78] sm:$0xff] %v584
    %642 = vst [vmem:[#allocation3 + $0x80] sm:$0xff] %v588
    %643 = vst [vmem:[#allocation3 + $0x88] sm:$0xff] %v590
    %644 = vst [vmem:[#allocation3 + $0x90] sm:$0xff] %v592
    %645 = vst [vmem:[#allocation3 + $0x98] sm:$0xff] %v594
    %646 = vst [vmem:[#allocation3 + $0xa0] sm:$0xff] %v598
    %647 = vst [vmem:[#allocation3 + $0xa8] sm:$0xff] %v600
    %648 = vst [vmem:[#allocation3 + $0xb0] sm:$0xff] %v602
    %649 = vst [vmem:[#allocation3 + $0xb8] sm:$0xff] %v604
    %650 = vst [vmem:[#allocation3 + $0xc0] sm:$0xff] %v608
    %651 = vst [vmem:[#allocation3 + $0xc8] sm:$0xff] %v610
    %652 = vst [vmem:[#allocation3 + $0xd0] sm:$0xff] %v612
    %653 = vst [vmem:[#allocation3 + $0xd8] sm:$0xff] %v614
    %654 = vst [vmem:[#allocation3 + $0xe0] sm:$0xff] %v618
    %655 = vst [vmem:[#allocation3 + $0xe8] sm:$0xff] %v620
    %656 = vst [vmem:[#allocation3 + $0xf0] sm:$0xff] %v622
    %657 = vst [vmem:[#allocation3 + $0xf8] sm:$0xff] %v624
    // Predicated region
    $region22: #{tpu_custom_call.1} parent=1 // pred_check
      _
    $region23: #{tpu_custom_call.1} parent=1 // pred_check_branch
      %659 = sbr.rel (0) target = $region25
    $region24: #{tpu_custom_call.1} parent=1 // pred_region
      %s661 = ssub.s32 4096, 4096
      %662 = vsyncadd [#allocation4], %s661
      %s663 = sshll.u32 [#allocation3], 4
      %s664 = int_to_ptr.vmem [resolvable:$true] %s663
      %669 = dma.vmem_to_hbm [thread:$0]  %s664, 4096, %s4, [#allocation4], 256, 256, 16
    $region25: #{tpu_custom_call.1} parent=1 // pred_fallthru
      _
    // Predicated region
    $region26: #{tpu_custom_call.1} parent=1 // pred_check
      _
    $region27: #{tpu_custom_call.1} parent=1 // pred_check_branch
      %671 = sbr.rel (0) target = $region29
    $region28: #{tpu_custom_call.1} parent=1 // pred_region
      %672 = dma.done [#allocation4], 4096
    $region29: #{tpu_custom_call.1} parent=1 // pred_fallthru
      _
    %673 = vsyncpa [#allocation4], 1

</llo_original>
